<compile_context>
chip_gen: v7x
topology: tpu7x:2x2x1
jax: 0.10.0
libtpu: 0.0.40
codegen_flags: <defaults>
</compile_context>

<pallas_src>
import jax
import jax.numpy as jnp
from jax.experimental import pallas as pl
from jax.experimental.pallas import tpu as pltpu


# ----------------------------------------------------------------------------
# Pallas kernel: out = x @ (I ⊗ G(θ) ⊗ I) exploiting the Kronecker sparsity.
# Refs have block shape (tm, 4, d2); axis 1 is the 2-qubit gate axis.
# ----------------------------------------------------------------------------
def _ms_xx_kernel(cs_ref, xr_ref, xi_ref, or_ref, oi_ref):
    c = cs_ref[0]          # cos(theta), scalar from SMEM
    s = cs_ref[1]          # sin(theta), scalar from SMEM
    xr = xr_ref[...]       # (tm, 4, d2)
    xi = xi_ref[...]       # (tm, 4, d2)
    # Static, fully unrolled loop over the 4 gate basis states.
    for q in range(4):
        qf = 3 - q  # anti-diagonal (bit-flip) partner
        or_ref[:, q:q + 1, :] = (
            c * xr[:, q:q + 1, :] + s * xi[:, qf:qf + 1, :]
        ).astype(or_ref.dtype)
        oi_ref[:, q:q + 1, :] = (
            c * xi[:, q:q + 1, :] - s * xr[:, qf:qf + 1, :]
        ).astype(oi_ref.dtype)


# ----------------------------------------------------------------------------
# Wrapper (mirrors Mølmer_Sørensen_XX_gate.forward)
# ----------------------------------------------------------------------------
def ms_xx_gate_forward(x, params, n_qubit, index):
    """x = (x_real, x_imag), each (batch, 2**n_qubit) float32; params shape (1,)."""
    x_r, x_i = x
    B, D = x_r.shape
    assert 0 <= index <= n_qubit - 2
    d1 = 2 ** index
    d2 = 2 ** (n_qubit - index - 2)
    assert D == d1 * 4 * d2

    # Two scalars -> SMEM.
    cs = jnp.concatenate([jnp.cos(params), jnp.sin(params)]).astype(jnp.float32)

    # Free (metadata-only) reshape: rows = (batch, d1), last two dims = (4, d2).
    M = B * d1
    xr3 = x_r.reshape(M, 4, d2)
    xi3 = x_i.reshape(M, 4, d2)

    # Tile the independent row axis; keep each block around <=1 MiB so
    # double-buffered in/out blocks fit comfortably in scoped VMEM on all gens.
    row_bytes = 4 * d2 * x_r.dtype.itemsize
    tm = max(1, min(M, (1 << 20) // row_bytes))
    nm = pl.cdiv(M, tm)

    blk = pl.BlockSpec((tm, 4, d2), lambda i: (i, 0, 0))

    out_r3, out_i3 = pl.pallas_call(
        _ms_xx_kernel,
        out_shape=(
            jax.ShapeDtypeStruct((M, 4, d2), x_r.dtype),
            jax.ShapeDtypeStruct((M, 4, d2), x_i.dtype),
        ),
        grid=(nm,),
        in_specs=[
            pl.BlockSpec(memory_space=pltpu.MemorySpace.SMEM),  # cos/sin scalars
            blk,  # x_real
            blk,  # x_imag
        ],
        out_specs=(blk, blk),
        compiler_params=pltpu.CompilerParams(
            dimension_semantics=("parallel",),
        ),
        cost_estimate=pl.CostEstimate(
            flops=6 * B * D,
            transcendentals=0,
            bytes_accessed=4 * B * D * x_r.dtype.itemsize + 8,
        ),
    )(cs, xr3, xi3)

    return out_r3.reshape(B, D), out_i3.reshape(B, D)


# ----------------------------------------------------------------------------
# Dense reference (only for the correctness check; mirrors the PyTorch glue)
# ----------------------------------------------------------------------------
def build_ms_xx_operator(params, n_qubit, index):
    cos = jnp.cos(params)[0]
    sin = jnp.sin(params)[0]
    real_gate = cos * jnp.eye(4, dtype=jnp.float32)
    imag_gate = -sin * jnp.fliplr(jnp.eye(4, dtype=jnp.float32))
    d1 = 2 ** index
    d2 = 2 ** (n_qubit - index - 2)
    id1 = jnp.eye(d1, dtype=jnp.float32)
    id2 = jnp.eye(d2, dtype=jnp.float32)
    # Identity factors have zero imaginary part, so the complex kron collapses:
    op_r = jnp.kron(jnp.kron(id1, real_gate), id2)
    op_i = jnp.kron(jnp.kron(id1, imag_gate), id2)
    return op_r, op_i


# ----------------------------------------------------------------------------
# Demo
# ----------------------------------------------------------------------------
if __name__ == "__main__":
    # Small configuration: 7 qubits -> state dim 128 (lane-aligned), batch 8.
    n_qubit = 7
    index = 2
    batch = 8
    dim = 2 ** n_qubit

    key = jax.random.PRNGKey(0)
    kr, ki = jax.random.split(key)
    x_real = jax.random.normal(kr, (batch, dim), dtype=jnp.float32)
    x_imag = jax.random.normal(ki, (batch, dim), dtype=jnp.float32)

    # Use a nonzero angle so both the cos and sin (bit-flip) paths are exercised.
    params = jnp.array([0.37], dtype=jnp.float32)

    out_r, out_i = ms_xx_gate_forward((x_real, x_imag), params, n_qubit, index)
    jax.block_until_ready((out_r, out_i))

    # Reference check against the dense complex matmul (same math as PyTorch).
    op_r, op_i = build_ms_xx_operator(params, n_qubit, index)
    ref_r = x_real @ op_r - x_imag @ op_i
    ref_i = x_real @ op_i + x_imag @ op_r
    assert jnp.allclose(out_r, ref_r, atol=1e-5), "real part mismatch"
    assert jnp.allclose(out_i, ref_i, atol=1e-5), "imag part mismatch"

    print("KERNEL_OK")
</pallas_src>

<mosaic_0001>
module attributes {stable_mosaic.version = 11 : i64} {
  func.func @_ms_xx_kernel(%arg0: i32, %arg1: memref<2xf32, #tpu.memory_space<smem>>, %arg2: memref<32x4x8xf32, #tpu.memory_space<vmem>>, %arg3: memref<32x4x8xf32, #tpu.memory_space<vmem>>, %arg4: memref<32x4x8xf32, #tpu.memory_space<vmem>>, %arg5: memref<32x4x8xf32, #tpu.memory_space<vmem>>) attributes {dimension_semantics = [#tpu.dimension_semantics<parallel>], iteration_bounds = array<i64: 1>, scalar_prefetch = 0 : i64, scratch_operands = 0 : i64, tpu.core_type = #tpu.core_type<tc>, window_params = [{transform_indices = @transform_0, window_bounds = array<i64: 2>}, {transform_indices = @transform_1, window_bounds = array<i64: 32, 4, 8>}, {transform_indices = @transform_2, window_bounds = array<i64: 32, 4, 8>}, {transform_indices = @transform_3, window_bounds = array<i64: 32, 4, 8>}, {transform_indices = @transform_4, window_bounds = array<i64: 32, 4, 8>}]} {
    %c0 = arith.constant 0 : index
    %0 = memref.load %arg1[%c0] : memref<2xf32, #tpu.memory_space<smem>>
    %c1 = arith.constant 1 : index
    %1 = memref.load %arg1[%c1] : memref<2xf32, #tpu.memory_space<smem>>
    %c0_0 = arith.constant 0 : index
    %c0_1 = arith.constant 0 : index
    %c0_2 = arith.constant 0 : index
    %2 = vector.load %arg2[%c0_0, %c0_1, %c0_2] : memref<32x4x8xf32, #tpu.memory_space<vmem>>, vector<32x4x8xf32>
    %c0_3 = arith.constant 0 : index
    %c0_4 = arith.constant 0 : index
    %c0_5 = arith.constant 0 : index
    %3 = vector.load %arg3[%c0_3, %c0_4, %c0_5] : memref<32x4x8xf32, #tpu.memory_space<vmem>>, vector<32x4x8xf32>
    %4 = vector.extract_strided_slice %2 {offsets = [0, 0, 0], sizes = [32, 1, 8], strides = [1, 1, 1]} : vector<32x4x8xf32> to vector<32x1x8xf32>
    %5 = vector.broadcast %0 : f32 to vector<32x1x8xf32>
    %6 = arith.mulf %5, %4 : vector<32x1x8xf32>
    %7 = vector.extract_strided_slice %3 {offsets = [0, 3, 0], sizes = [32, 1, 8], strides = [1, 1, 1]} : vector<32x4x8xf32> to vector<32x1x8xf32>
    %8 = vector.broadcast %1 : f32 to vector<32x1x8xf32>
    %9 = arith.mulf %8, %7 : vector<32x1x8xf32>
    %10 = arith.addf %6, %9 : vector<32x1x8xf32>
    %c0_6 = arith.constant 0 : index
    %c0_7 = arith.constant 0 : index
    %c0_8 = arith.constant 0 : index
    %11 = vector.load %arg4[%c0_6, %c0_7, %c0_8] : memref<32x4x8xf32, #tpu.memory_space<vmem>>, vector<32x1x8xf32>
    tpu.vector_store %arg4[%c0_6, %c0_7, %c0_8], %10 {strides = array<i32>} : memref<32x4x8xf32, #tpu.memory_space<vmem>>, vector<32x1x8xf32>,
    %12 = vector.extract_strided_slice %3 {offsets = [0, 0, 0], sizes = [32, 1, 8], strides = [1, 1, 1]} : vector<32x4x8xf32> to vector<32x1x8xf32>
    %13 = vector.broadcast %0 : f32 to vector<32x1x8xf32>
    %14 = arith.mulf %13, %12 : vector<32x1x8xf32>
    %15 = vector.extract_strided_slice %2 {offsets = [0, 3, 0], sizes = [32, 1, 8], strides = [1, 1, 1]} : vector<32x4x8xf32> to vector<32x1x8xf32>
    %16 = vector.broadcast %1 : f32 to vector<32x1x8xf32>
    %17 = arith.mulf %16, %15 : vector<32x1x8xf32>
    %18 = arith.subf %14, %17 : vector<32x1x8xf32>
    %c0_9 = arith.constant 0 : index
    %c0_10 = arith.constant 0 : index
    %c0_11 = arith.constant 0 : index
    %19 = vector.load %arg5[%c0_9, %c0_10, %c0_11] : memref<32x4x8xf32, #tpu.memory_space<vmem>>, vector<32x1x8xf32>
    tpu.vector_store %arg5[%c0_9, %c0_10, %c0_11], %18 {strides = array<i32>} : memref<32x4x8xf32, #tpu.memory_space<vmem>>, vector<32x1x8xf32>,
    %20 = vector.extract_strided_slice %2 {offsets = [0, 1, 0], sizes = [32, 1, 8], strides = [1, 1, 1]} : vector<32x4x8xf32> to vector<32x1x8xf32>
    %21 = vector.broadcast %0 : f32 to vector<32x1x8xf32>
    %22 = arith.mulf %21, %20 : vector<32x1x8xf32>
    %23 = vector.extract_strided_slice %3 {offsets = [0, 2, 0], sizes = [32, 1, 8], strides = [1, 1, 1]} : vector<32x4x8xf32> to vector<32x1x8xf32>
    %24 = vector.broadcast %1 : f32 to vector<32x1x8xf32>
    %25 = arith.mulf %24, %23 : vector<32x1x8xf32>
    %26 = arith.addf %22, %25 : vector<32x1x8xf32>
    %c0_12 = arith.constant 0 : index
    %c1_13 = arith.constant 1 : index
    %c0_14 = arith.constant 0 : index
    %27 = vector.load %arg4[%c0_12, %c1_13, %c0_14] : memref<32x4x8xf32, #tpu.memory_space<vmem>>, vector<32x1x8xf32>
    tpu.vector_store %arg4[%c0_12, %c1_13, %c0_14], %26 {strides = array<i32>} : memref<32x4x8xf32, #tpu.memory_space<vmem>>, vector<32x1x8xf32>,
    %28 = vector.extract_strided_slice %3 {offsets = [0, 1, 0], sizes = [32, 1, 8], strides = [1, 1, 1]} : vector<32x4x8xf32> to vector<32x1x8xf32>
    %29 = vector.broadcast %0 : f32 to vector<32x1x8xf32>
    %30 = arith.mulf %29, %28 : vector<32x1x8xf32>
    %31 = vector.extract_strided_slice %2 {offsets = [0, 2, 0], sizes = [32, 1, 8], strides = [1, 1, 1]} : vector<32x4x8xf32> to vector<32x1x8xf32>
    %32 = vector.broadcast %1 : f32 to vector<32x1x8xf32>
    %33 = arith.mulf %32, %31 : vector<32x1x8xf32>
    %34 = arith.subf %30, %33 : vector<32x1x8xf32>
    %c0_15 = arith.constant 0 : index
    %c1_16 = arith.constant 1 : index
    %c0_17 = arith.constant 0 : index
    %35 = vector.load %arg5[%c0_15, %c1_16, %c0_17] : memref<32x4x8xf32, #tpu.memory_space<vmem>>, vector<32x1x8xf32>
    tpu.vector_store %arg5[%c0_15, %c1_16, %c0_17], %34 {strides = array<i32>} : memref<32x4x8xf32, #tpu.memory_space<vmem>>, vector<32x1x8xf32>,
    %36 = vector.extract_strided_slice %2 {offsets = [0, 2, 0], sizes = [32, 1, 8], strides = [1, 1, 1]} : vector<32x4x8xf32> to vector<32x1x8xf32>
    %37 = vector.broadcast %0 : f32 to vector<32x1x8xf32>
    %38 = arith.mulf %37, %36 : vector<32x1x8xf32>
    %39 = vector.extract_strided_slice %3 {offsets = [0, 1, 0], sizes = [32, 1, 8], strides = [1, 1, 1]} : vector<32x4x8xf32> to vector<32x1x8xf32>
    %40 = vector.broadcast %1 : f32 to vector<32x1x8xf32>
    %41 = arith.mulf %40, %39 : vector<32x1x8xf32>
    %42 = arith.addf %38, %41 : vector<32x1x8xf32>
    %c0_18 = arith.constant 0 : index
    %c2 = arith.constant 2 : index
    %c0_19 = arith.constant 0 : index
    %43 = vector.load %arg4[%c0_18, %c2, %c0_19] : memref<32x4x8xf32, #tpu.memory_space<vmem>>, vector<32x1x8xf32>
    tpu.vector_store %arg4[%c0_18, %c2, %c0_19], %42 {strides = array<i32>} : memref<32x4x8xf32, #tpu.memory_space<vmem>>, vector<32x1x8xf32>,
    %44 = vector.extract_strided_slice %3 {offsets = [0, 2, 0], sizes = [32, 1, 8], strides = [1, 1, 1]} : vector<32x4x8xf32> to vector<32x1x8xf32>
    %45 = vector.broadcast %0 : f32 to vector<32x1x8xf32>
    %46 = arith.mulf %45, %44 : vector<32x1x8xf32>
    %47 = vector.extract_strided_slice %2 {offsets = [0, 1, 0], sizes = [32, 1, 8], strides = [1, 1, 1]} : vector<32x4x8xf32> to vector<32x1x8xf32>
    %48 = vector.broadcast %1 : f32 to vector<32x1x8xf32>
    %49 = arith.mulf %48, %47 : vector<32x1x8xf32>
    %50 = arith.subf %46, %49 : vector<32x1x8xf32>
    %c0_20 = arith.constant 0 : index
    %c2_21 = arith.constant 2 : index
    %c0_22 = arith.constant 0 : index
    %51 = vector.load %arg5[%c0_20, %c2_21, %c0_22] : memref<32x4x8xf32, #tpu.memory_space<vmem>>, vector<32x1x8xf32>
    tpu.vector_store %arg5[%c0_20, %c2_21, %c0_22], %50 {strides = array<i32>} : memref<32x4x8xf32, #tpu.memory_space<vmem>>, vector<32x1x8xf32>,
    %52 = vector.extract_strided_slice %2 {offsets = [0, 3, 0], sizes = [32, 1, 8], strides = [1, 1, 1]} : vector<32x4x8xf32> to vector<32x1x8xf32>
    %53 = vector.broadcast %0 : f32 to vector<32x1x8xf32>
    %54 = arith.mulf %53, %52 : vector<32x1x8xf32>
    %55 = vector.extract_strided_slice %3 {offsets = [0, 0, 0], sizes = [32, 1, 8], strides = [1, 1, 1]} : vector<32x4x8xf32> to vector<32x1x8xf32>
    %56 = vector.broadcast %1 : f32 to vector<32x1x8xf32>
    %57 = arith.mulf %56, %55 : vector<32x1x8xf32>
    %58 = arith.addf %54, %57 : vector<32x1x8xf32>
    %c0_23 = arith.constant 0 : index
    %c3 = arith.constant 3 : index
    %c0_24 = arith.constant 0 : index
    %59 = vector.load %arg4[%c0_23, %c3, %c0_24] : memref<32x4x8xf32, #tpu.memory_space<vmem>>, vector<32x1x8xf32>
    tpu.vector_store %arg4[%c0_23, %c3, %c0_24], %58 {strides = array<i32>} : memref<32x4x8xf32, #tpu.memory_space<vmem>>, vector<32x1x8xf32>,
    %60 = vector.extract_strided_slice %3 {offsets = [0, 3, 0], sizes = [32, 1, 8], strides = [1, 1, 1]} : vector<32x4x8xf32> to vector<32x1x8xf32>
    %61 = vector.broadcast %0 : f32 to vector<32x1x8xf32>
    %62 = arith.mulf %61, %60 : vector<32x1x8xf32>
    %63 = vector.extract_strided_slice %2 {offsets = [0, 0, 0], sizes = [32, 1, 8], strides = [1, 1, 1]} : vector<32x4x8xf32> to vector<32x1x8xf32>
    %64 = vector.broadcast %1 : f32 to vector<32x1x8xf32>
    %65 = arith.mulf %64, %63 : vector<32x1x8xf32>
    %66 = arith.subf %62, %65 : vector<32x1x8xf32>
    %c0_25 = arith.constant 0 : index
    %c3_26 = arith.constant 3 : index
    %c0_27 = arith.constant 0 : index
    %67 = vector.load %arg5[%c0_25, %c3_26, %c0_27] : memref<32x4x8xf32, #tpu.memory_space<vmem>>, vector<32x1x8xf32>
    tpu.vector_store %arg5[%c0_25, %c3_26, %c0_27], %66 {strides = array<i32>} : memref<32x4x8xf32, #tpu.memory_space<vmem>>, vector<32x1x8xf32>,
    return
  }
  func.func @transform_0(%arg0: i32) -> i32 {
    %c0_i32 = arith.constant 0 : i32
    %c0_i32_0 = arith.constant 0 : i32
    return %c0_i32 : i32
  }
  func.func @transform_1(%arg0: i32) -> (i32, i32, i32) {
    %c0_i32 = arith.constant 0 : i32
    %c0_i32_0 = arith.constant 0 : i32
    %c0_i32_1 = arith.constant 0 : i32
    return %arg0, %c0_i32, %c0_i32_0 : i32, i32, i32
  }
  func.func @transform_2(%arg0: i32) -> (i32, i32, i32) {
    %c0_i32 = arith.constant 0 : i32
    %c0_i32_0 = arith.constant 0 : i32
    %c0_i32_1 = arith.constant 0 : i32
    return %arg0, %c0_i32, %c0_i32_0 : i32, i32, i32
  }
  func.func @transform_3(%arg0: i32) -> (i32, i32, i32) {
    %c0_i32 = arith.constant 0 : i32
    %c0_i32_0 = arith.constant 0 : i32
    %c0_i32_1 = arith.constant 0 : i32
    return %arg0, %c0_i32, %c0_i32_0 : i32, i32, i32
  }
  func.func @transform_4(%arg0: i32) -> (i32, i32, i32) {
    %c0_i32 = arith.constant 0 : i32
    %c0_i32_0 = arith.constant 0 : i32
    %c0_i32_1 = arith.constant 0 : i32
    return %arg0, %c0_i32, %c0_i32_0 : i32, i32, i32
  }
}

</mosaic_0001>

<llo_original>
// kernel: tpu_custom_call.1
$region0: #{tpu_custom_call.1}
  #allocation0 [shape = 'u32[]', space=smem, size = 0x4, offset = 0x4, fixed_abs, tag = 'smem constant byte address 0x4 - core index']
  #allocation1 [shape = 'u32[144,128]{1,0:T(1,128)}', space=vmem, size = 0x12000, scoped, tag = 'internal scratch']
  %s0 = inlined_call_operand.vmem [shape: f32[2], index: 0, kind: input, shape index: {}]
  %s1 = inlined_call_operand.vmem [shape: f32[32,4,8], index: 1, kind: input, shape index: {}]
  %s2 = inlined_call_operand.vmem [shape: f32[32,4,8], index: 2, kind: input, shape index: {}]
  %s3 = inlined_call_operand.vmem [shape: f32[32,4,8], index: 3, kind: output, shape index: {0}]
  %s4 = inlined_call_operand.vmem [shape: f32[32,4,8], index: 4, kind: output, shape index: {1}]
  %5 = xla_tuple %s3, %s4
  %s6 = sld [smem:[#allocation0]]
  $region34: #{tpu_custom_call.1} parent=0
    _
  %s8 = ssub.s32 1, %s6
  %s9 = scalar_select 0, %s8, %s6
  $region1: #{tpu_custom_call.1} parent=0
    #allocation2 [shape = 'u8[512]{0}', space=smem, size = 0x200, scoped, tag = 'input window, operand 0, single buffered']
    #allocation3 [shape = 's32[1]{0}', space=sflag, size = 0x4, scoped, tag = 'scoped memory for tpu_custom_call.1']
    %10 = vsyncpa [#allocation3], 0
    // Predicated region
    $region2: #{tpu_custom_call.1} parent=1 // pred_check
      _
    $region3: #{tpu_custom_call.1} parent=1 // pred_check_branch
      %12 = sbr.rel (0) target = $region5
    $region4: #{tpu_custom_call.1} parent=1 // pred_region
      %s14 = ssub.s32 16, 16
      %15 = vsyncadd [#allocation3], %s14
      %s17 = sshll.u32 %s0, 4
      %s18 = int_to_ptr.vmem [resolvable:$true] %s17
      %20 = dma.vmem_to_smem %s18, 16, [#allocation2], [#allocation3]
    $region5: #{tpu_custom_call.1} parent=1 // pred_fallthru
      _
    // Predicated region
    $region6: #{tpu_custom_call.1} parent=1 // pred_check
      _
    $region7: #{tpu_custom_call.1} parent=1 // pred_check_branch
      %22 = sbr.rel (0) target = $region9
    $region8: #{tpu_custom_call.1} parent=1 // pred_region
      _
    $region9: #{tpu_custom_call.1} parent=1 // pred_fallthru
      _
    // Predicated region
    $region10: #{tpu_custom_call.1} parent=1 // pred_check
      _
    $region11: #{tpu_custom_call.1} parent=1 // pred_check_branch
      %24 = sbr.rel (0) target = $region13
    $region12: #{tpu_custom_call.1} parent=1 // pred_region
      _
    $region13: #{tpu_custom_call.1} parent=1 // pred_fallthru
      _
    // Predicated region
    $region14: #{tpu_custom_call.1} parent=1 // pred_check
      _
    $region15: #{tpu_custom_call.1} parent=1 // pred_check_branch
      %26 = sbr.rel (0) target = $region17
    $region16: #{tpu_custom_call.1} parent=1 // pred_region
      %27 = dma.done [#allocation3], 16
    $region17: #{tpu_custom_call.1} parent=1 // pred_fallthru
      _
    %28 = sfence
    %s29 = sld [smem:[#allocation2]]
    %s30 = sld [smem:[#allocation2 + $0x1]]
    %v31 = vld [vmem:[%s1] sm:$0xf]
    %v32 = vld [vmem:[%s1 + $0x4] sm:$0xf]
    %v33 = vld [vmem:[%s1 + $0x8] sm:$0xf]
    %v34 = vld [vmem:[%s1 + $0xc] sm:$0xf]
    %v35 = vld [vmem:[%s1 + $0x10] sm:$0xf]
    %v36 = vld [vmem:[%s1 + $0x14] sm:$0xf]
    %v37 = vld [vmem:[%s1 + $0x18] sm:$0xf]
    %v38 = vld [vmem:[%s1 + $0x1c] sm:$0xf]
    %v39 = vld [vmem:[%s1 + $0x20] sm:$0xf]
    %v40 = vld [vmem:[%s1 + $0x24] sm:$0xf]
    %v41 = vld [vmem:[%s1 + $0x28] sm:$0xf]
    %v42 = vld [vmem:[%s1 + $0x2c] sm:$0xf]
    %v43 = vld [vmem:[%s1 + $0x30] sm:$0xf]
    %v44 = vld [vmem:[%s1 + $0x34] sm:$0xf]
    %v45 = vld [vmem:[%s1 + $0x38] sm:$0xf]
    %v46 = vld [vmem:[%s1 + $0x3c] sm:$0xf]
    %v47 = vld [vmem:[%s1 + $0x40] sm:$0xf]
    %v48 = vld [vmem:[%s1 + $0x44] sm:$0xf]
    %v49 = vld [vmem:[%s1 + $0x48] sm:$0xf]
    %v50 = vld [vmem:[%s1 + $0x4c] sm:$0xf]
    %v51 = vld [vmem:[%s1 + $0x50] sm:$0xf]
    %v52 = vld [vmem:[%s1 + $0x54] sm:$0xf]
    %v53 = vld [vmem:[%s1 + $0x58] sm:$0xf]
    %v54 = vld [vmem:[%s1 + $0x5c] sm:$0xf]
    %v55 = vld [vmem:[%s1 + $0x60] sm:$0xf]
    %v56 = vld [vmem:[%s1 + $0x64] sm:$0xf]
    %v57 = vld [vmem:[%s1 + $0x68] sm:$0xf]
    %v58 = vld [vmem:[%s1 + $0x6c] sm:$0xf]
    %v59 = vld [vmem:[%s1 + $0x70] sm:$0xf]
    %v60 = vld [vmem:[%s1 + $0x74] sm:$0xf]
    %v61 = vld [vmem:[%s1 + $0x78] sm:$0xf]
    %v62 = vld [vmem:[%s1 + $0x7c] sm:$0xf]
    %v63 = vld [vmem:[%s2] sm:$0xf]
    %v64 = vld [vmem:[%s2 + $0x4] sm:$0xf]
    %v65 = vld [vmem:[%s2 + $0x8] sm:$0xf]
    %v66 = vld [vmem:[%s2 + $0xc] sm:$0xf]
    %v67 = vld [vmem:[%s2 + $0x10] sm:$0xf]
    %v68 = vld [vmem:[%s2 + $0x14] sm:$0xf]
    %v69 = vld [vmem:[%s2 + $0x18] sm:$0xf]
    %v70 = vld [vmem:[%s2 + $0x1c] sm:$0xf]
    %v71 = vld [vmem:[%s2 + $0x20] sm:$0xf]
    %v72 = vld [vmem:[%s2 + $0x24] sm:$0xf]
    %v73 = vld [vmem:[%s2 + $0x28] sm:$0xf]
    %v74 = vld [vmem:[%s2 + $0x2c] sm:$0xf]
    %v75 = vld [vmem:[%s2 + $0x30] sm:$0xf]
    %v76 = vld [vmem:[%s2 + $0x34] sm:$0xf]
    %v77 = vld [vmem:[%s2 + $0x38] sm:$0xf]
    %v78 = vld [vmem:[%s2 + $0x3c] sm:$0xf]
    %v79 = vld [vmem:[%s2 + $0x40] sm:$0xf]
    %v80 = vld [vmem:[%s2 + $0x44] sm:$0xf]
    %v81 = vld [vmem:[%s2 + $0x48] sm:$0xf]
    %v82 = vld [vmem:[%s2 + $0x4c] sm:$0xf]
    %v83 = vld [vmem:[%s2 + $0x50] sm:$0xf]
    %v84 = vld [vmem:[%s2 + $0x54] sm:$0xf]
    %v85 = vld [vmem:[%s2 + $0x58] sm:$0xf]
    %v86 = vld [vmem:[%s2 + $0x5c] sm:$0xf]
    %v87 = vld [vmem:[%s2 + $0x60] sm:$0xf]
    %v88 = vld [vmem:[%s2 + $0x64] sm:$0xf]
    %v89 = vld [vmem:[%s2 + $0x68] sm:$0xf]
    %v90 = vld [vmem:[%s2 + $0x6c] sm:$0xf]
    %v91 = vld [vmem:[%s2 + $0x70] sm:$0xf]
    %v92 = vld [vmem:[%s2 + $0x74] sm:$0xf]
    %v93 = vld [vmem:[%s2 + $0x78] sm:$0xf]
    %v94 = vld [vmem:[%s2 + $0x7c] sm:$0xf]
    %v95 = vstv %s29
    %v96 = vmul.f32 %v95, %v31
    %v97 = vmul.f32 %v95, %v32
    %v98 = vmul.f32 %v95, %v33
    %v99 = vmul.f32 %v95, %v34
    %v100 = vmul.f32 %v95, %v35
    %v101 = vmul.f32 %v95, %v36
    %v102 = vmul.f32 %v95, %v37
    %v103 = vmul.f32 %v95, %v38
    %v104 = vmul.f32 %v95, %v39
    %v105 = vmul.f32 %v95, %v40
    %v106 = vmul.f32 %v95, %v41
    %v107 = vmul.f32 %v95, %v42
    %v108 = vmul.f32 %v95, %v43
    %v109 = vmul.f32 %v95, %v44
    %v110 = vmul.f32 %v95, %v45
    %v111 = vmul.f32 %v95, %v46
    %v112 = vmul.f32 %v95, %v47
    %v113 = vmul.f32 %v95, %v48
    %v114 = vmul.f32 %v95, %v49
    %v115 = vmul.f32 %v95, %v50
    %v116 = vmul.f32 %v95, %v51
    %v117 = vmul.f32 %v95, %v52
    %v118 = vmul.f32 %v95, %v53
    %v119 = vmul.f32 %v95, %v54
    %v120 = vmul.f32 %v95, %v55
    %v121 = vmul.f32 %v95, %v56
    %v122 = vmul.f32 %v95, %v57
    %v123 = vmul.f32 %v95, %v58
    %v124 = vmul.f32 %v95, %v59
    %v125 = vmul.f32 %v95, %v60
    %v126 = vmul.f32 %v95, %v61
    %v127 = vmul.f32 %v95, %v62
    %v128 = vstv %s30
    %v129 = vmul.f32 %v128, %v63
    %v130 = vmul.f32 %v128, %v64
    %v131 = vmul.f32 %v128, %v65
    %v132 = vmul.f32 %v128, %v66
    %v133 = vmul.f32 %v128, %v67
    %v134 = vmul.f32 %v128, %v68
    %v135 = vmul.f32 %v128, %v69
    %v136 = vmul.f32 %v128, %v70
    %v137 = vmul.f32 %v128, %v71
    %v138 = vmul.f32 %v128, %v72
    %v139 = vmul.f32 %v128, %v73
    %v140 = vmul.f32 %v128, %v74
    %v141 = vmul.f32 %v128, %v75
    %v142 = vmul.f32 %v128, %v76
    %v143 = vmul.f32 %v128, %v77
    %v144 = vmul.f32 %v128, %v78
    %v145 = vmul.f32 %v128, %v79
    %v146 = vmul.f32 %v128, %v80
    %v147 = vmul.f32 %v128, %v81
    %v148 = vmul.f32 %v128, %v82
    %v149 = vmul.f32 %v128, %v83
    %v150 = vmul.f32 %v128, %v84
    %v151 = vmul.f32 %v128, %v85
    %v152 = vmul.f32 %v128, %v86
    %v153 = vmul.f32 %v128, %v87
    %v154 = vmul.f32 %v128, %v88
    %v155 = vmul.f32 %v128, %v89
    %v156 = vmul.f32 %v128, %v90
    %v157 = vmul.f32 %v128, %v91
    %v158 = vmul.f32 %v128, %v92
    %v159 = vmul.f32 %v128, %v93
    %v160 = vmul.f32 %v128, %v94
    %v193 = vrot.slane %v129, 3
    %v194 = vrot.slane %v130, 3
    %v195 = vrot.slane %v131, 3
    %v196 = vrot.slane %v132, 3
    %v197 = vrot.slane %v133, 3
    %v198 = vrot.slane %v134, 3
    %v199 = vrot.slane %v135, 3
    %v200 = vrot.slane %v136, 3
    %v201 = vrot.slane %v137, 3
    %v202 = vrot.slane %v138, 3
    %v203 = vrot.slane %v139, 3
    %v204 = vrot.slane %v140, 3
    %v205 = vrot.slane %v141, 3
    %v206 = vrot.slane %v142, 3
    %v207 = vrot.slane %v143, 3
    %v208 = vrot.slane %v144, 3
    %v209 = vrot.slane %v145, 3
    %v210 = vrot.slane %v146, 3
    %v211 = vrot.slane %v147, 3
    %v212 = vrot.slane %v148, 3
    %v213 = vrot.slane %v149, 3
    %v214 = vrot.slane %v150, 3
    %v215 = vrot.slane %v151, 3
    %v216 = vrot.slane %v152, 3
    %v217 = vrot.slane %v153, 3
    %v218 = vrot.slane %v154, 3
    %v219 = vrot.slane %v155, 3
    %v220 = vrot.slane %v156, 3
    %v221 = vrot.slane %v157, 3
    %v222 = vrot.slane %v158, 3
    %v223 = vrot.slane %v159, 3
    %v224 = vrot.slane %v160, 3
    %v257 = vadd.f32 %v96, %v193
    %v258 = vadd.f32 %v97, %v194
    %v259 = vadd.f32 %v98, %v195
    %v260 = vadd.f32 %v99, %v196
    %v261 = vadd.f32 %v100, %v197
    %v262 = vadd.f32 %v101, %v198
    %v263 = vadd.f32 %v102, %v199
    %v264 = vadd.f32 %v103, %v200
    %v265 = vadd.f32 %v104, %v201
    %v266 = vadd.f32 %v105, %v202
    %v267 = vadd.f32 %v106, %v203
    %v268 = vadd.f32 %v107, %v204
    %v269 = vadd.f32 %v108, %v205
    %v270 = vadd.f32 %v109, %v206
    %v271 = vadd.f32 %v110, %v207
    %v272 = vadd.f32 %v111, %v208
    %v273 = vadd.f32 %v112, %v209
    %v274 = vadd.f32 %v113, %v210
    %v275 = vadd.f32 %v114, %v211
    %v276 = vadd.f32 %v115, %v212
    %v277 = vadd.f32 %v116, %v213
    %v278 = vadd.f32 %v117, %v214
    %v279 = vadd.f32 %v118, %v215
    %v280 = vadd.f32 %v119, %v216
    %v281 = vadd.f32 %v120, %v217
    %v282 = vadd.f32 %v121, %v218
    %v283 = vadd.f32 %v122, %v219
    %v284 = vadd.f32 %v123, %v220
    %v285 = vadd.f32 %v124, %v221
    %v286 = vadd.f32 %v125, %v222
    %v287 = vadd.f32 %v126, %v223
    %v288 = vadd.f32 %v127, %v224
    %vm289 = vcmask 57344
    %290 = vst.msk [vmem:[%s3] sm:$0x1] %vm289, %v257
    %291 = vst.msk [vmem:[%s3 + $0x4] sm:$0x1] %vm289, %v258
    %292 = vst.msk [vmem:[%s3 + $0x8] sm:$0x1] %vm289, %v259
    %293 = vst.msk [vmem:[%s3 + $0xc] sm:$0x1] %vm289, %v260
    %294 = vst.msk [vmem:[%s3 + $0x10] sm:$0x1] %vm289, %v261
    %295 = vst.msk [vmem:[%s3 + $0x14] sm:$0x1] %vm289, %v262
    %296 = vst.msk [vmem:[%s3 + $0x18] sm:$0x1] %vm289, %v263
    %297 = vst.msk [vmem:[%s3 + $0x1c] sm:$0x1] %vm289, %v264
    %298 = vst.msk [vmem:[%s3 + $0x20] sm:$0x1] %vm289, %v265
    %299 = vst.msk [vmem:[%s3 + $0x24] sm:$0x1] %vm289, %v266
    %300 = vst.msk [vmem:[%s3 + $0x28] sm:$0x1] %vm289, %v267
    %301 = vst.msk [vmem:[%s3 + $0x2c] sm:$0x1] %vm289, %v268
    %302 = vst.msk [vmem:[%s3 + $0x30] sm:$0x1] %vm289, %v269
    %303 = vst.msk [vmem:[%s3 + $0x34] sm:$0x1] %vm289, %v270
    %304 = vst.msk [vmem:[%s3 + $0x38] sm:$0x1] %vm289, %v271
    %305 = vst.msk [vmem:[%s3 + $0x3c] sm:$0x1] %vm289, %v272
    %306 = vst.msk [vmem:[%s3 + $0x40] sm:$0x1] %vm289, %v273
    %307 = vst.msk [vmem:[%s3 + $0x44] sm:$0x1] %vm289, %v274
    %308 = vst.msk [vmem:[%s3 + $0x48] sm:$0x1] %vm289, %v275
    %309 = vst.msk [vmem:[%s3 + $0x4c] sm:$0x1] %vm289, %v276
    %310 = vst.msk [vmem:[%s3 + $0x50] sm:$0x1] %vm289, %v277
    %311 = vst.msk [vmem:[%s3 + $0x54] sm:$0x1] %vm289, %v278
    %312 = vst.msk [vmem:[%s3 + $0x58] sm:$0x1] %vm289, %v279
    %313 = vst.msk [vmem:[%s3 + $0x5c] sm:$0x1] %vm289, %v280
    %314 = vst.msk [vmem:[%s3 + $0x60] sm:$0x1] %vm289, %v281
    %315 = vst.msk [vmem:[%s3 + $0x64] sm:$0x1] %vm289, %v282
    %316 = vst.msk [vmem:[%s3 + $0x68] sm:$0x1] %vm289, %v283
    %317 = vst.msk [vmem:[%s3 + $0x6c] sm:$0x1] %vm289, %v284
    %318 = vst.msk [vmem:[%s3 + $0x70] sm:$0x1] %vm289, %v285
    %319 = vst.msk [vmem:[%s3 + $0x74] sm:$0x1] %vm289, %v286
    %320 = vst.msk [vmem:[%s3 + $0x78] sm:$0x1] %vm289, %v287
    %321 = vst.msk [vmem:[%s3 + $0x7c] sm:$0x1] %vm289, %v288
    %v322 = vmul.f32 %v95, %v63
    %v323 = vmul.f32 %v95, %v64
    %v324 = vmul.f32 %v95, %v65
    %v325 = vmul.f32 %v95, %v66
    %v326 = vmul.f32 %v95, %v67
    %v327 = vmul.f32 %v95, %v68
    %v328 = vmul.f32 %v95, %v69
    %v329 = vmul.f32 %v95, %v70
    %v330 = vmul.f32 %v95, %v71
    %v331 = vmul.f32 %v95, %v72
    %v332 = vmul.f32 %v95, %v73
    %v333 = vmul.f32 %v95, %v74
    %v334 = vmul.f32 %v95, %v75
    %v335 = vmul.f32 %v95, %v76
    %v336 = vmul.f32 %v95, %v77
    %v337 = vmul.f32 %v95, %v78
    %v338 = vmul.f32 %v95, %v79
    %v339 = vmul.f32 %v95, %v80
    %v340 = vmul.f32 %v95, %v81
    %v341 = vmul.f32 %v95, %v82
    %v342 = vmul.f32 %v95, %v83
    %v343 = vmul.f32 %v95, %v84
    %v344 = vmul.f32 %v95, %v85
    %v345 = vmul.f32 %v95, %v86
    %v346 = vmul.f32 %v95, %v87
    %v347 = vmul.f32 %v95, %v88
    %v348 = vmul.f32 %v95, %v89
    %v349 = vmul.f32 %v95, %v90
    %v350 = vmul.f32 %v95, %v91
    %v351 = vmul.f32 %v95, %v92
    %v352 = vmul.f32 %v95, %v93
    %v353 = vmul.f32 %v95, %v94
    %v354 = vmul.f32 %v128, %v31
    %v355 = vmul.f32 %v128, %v32
    %v356 = vmul.f32 %v128, %v33
    %v357 = vmul.f32 %v128, %v34
    %v358 = vmul.f32 %v128, %v35
    %v359 = vmul.f32 %v128, %v36
    %v360 = vmul.f32 %v128, %v37
    %v361 = vmul.f32 %v128, %v38
    %v362 = vmul.f32 %v128, %v39
    %v363 = vmul.f32 %v128, %v40
    %v364 = vmul.f32 %v128, %v41
    %v365 = vmul.f32 %v128, %v42
    %v366 = vmul.f32 %v128, %v43
    %v367 = vmul.f32 %v128, %v44
    %v368 = vmul.f32 %v128, %v45
    %v369 = vmul.f32 %v128, %v46
    %v370 = vmul.f32 %v128, %v47
    %v371 = vmul.f32 %v128, %v48
    %v372 = vmul.f32 %v128, %v49
    %v373 = vmul.f32 %v128, %v50
    %v374 = vmul.f32 %v128, %v51
    %v375 = vmul.f32 %v128, %v52
    %v376 = vmul.f32 %v128, %v53
    %v377 = vmul.f32 %v128, %v54
    %v378 = vmul.f32 %v128, %v55
    %v379 = vmul.f32 %v128, %v56
    %v380 = vmul.f32 %v128, %v57
    %v381 = vmul.f32 %v128, %v58
    %v382 = vmul.f32 %v128, %v59
    %v383 = vmul.f32 %v128, %v60
    %v384 = vmul.f32 %v128, %v61
    %v385 = vmul.f32 %v128, %v62
    %v418 = vrot.slane %v354, 3
    %v419 = vrot.slane %v355, 3
    %v420 = vrot.slane %v356, 3
    %v421 = vrot.slane %v357, 3
    %v422 = vrot.slane %v358, 3
    %v423 = vrot.slane %v359, 3
    %v424 = vrot.slane %v360, 3
    %v425 = vrot.slane %v361, 3
    %v426 = vrot.slane %v362, 3
    %v427 = vrot.slane %v363, 3
    %v428 = vrot.slane %v364, 3
    %v429 = vrot.slane %v365, 3
    %v430 = vrot.slane %v366, 3
    %v431 = vrot.slane %v367, 3
    %v432 = vrot.slane %v368, 3
    %v433 = vrot.slane %v369, 3
    %v434 = vrot.slane %v370, 3
    %v435 = vrot.slane %v371, 3
    %v436 = vrot.slane %v372, 3
    %v437 = vrot.slane %v373, 3
    %v438 = vrot.slane %v374, 3
    %v439 = vrot.slane %v375, 3
    %v440 = vrot.slane %v376, 3
    %v441 = vrot.slane %v377, 3
    %v442 = vrot.slane %v378, 3
    %v443 = vrot.slane %v379, 3
    %v444 = vrot.slane %v380, 3
    %v445 = vrot.slane %v381, 3
    %v446 = vrot.slane %v382, 3
    %v447 = vrot.slane %v383, 3
    %v448 = vrot.slane %v384, 3
    %v449 = vrot.slane %v385, 3
    %v482 = vsub.f32 %v322, %v418
    %v483 = vsub.f32 %v323, %v419
    %v484 = vsub.f32 %v324, %v420
    %v485 = vsub.f32 %v325, %v421
    %v486 = vsub.f32 %v326, %v422
    %v487 = vsub.f32 %v327, %v423
    %v488 = vsub.f32 %v328, %v424
    %v489 = vsub.f32 %v329, %v425
    %v490 = vsub.f32 %v330, %v426
    %v491 = vsub.f32 %v331, %v427
    %v492 = vsub.f32 %v332, %v428
    %v493 = vsub.f32 %v333, %v429
    %v494 = vsub.f32 %v334, %v430
    %v495 = vsub.f32 %v335, %v431
    %v496 = vsub.f32 %v336, %v432
    %v497 = vsub.f32 %v337, %v433
    %v498 = vsub.f32 %v338, %v434
    %v499 = vsub.f32 %v339, %v435
    %v500 = vsub.f32 %v340, %v436
    %v501 = vsub.f32 %v341, %v437
    %v502 = vsub.f32 %v342, %v438
    %v503 = vsub.f32 %v343, %v439
    %v504 = vsub.f32 %v344, %v440
    %v505 = vsub.f32 %v345, %v441
    %v506 = vsub.f32 %v346, %v442
    %v507 = vsub.f32 %v347, %v443
    %v508 = vsub.f32 %v348, %v444
    %v509 = vsub.f32 %v349, %v445
    %v510 = vsub.f32 %v350, %v446
    %v511 = vsub.f32 %v351, %v447
    %v512 = vsub.f32 %v352, %v448
    %v513 = vsub.f32 %v353, %v449
    %514 = vst.msk [vmem:[%s4] sm:$0x1] %vm289, %v482
    %515 = vst.msk [vmem:[%s4 + $0x4] sm:$0x1] %vm289, %v483
    %516 = vst.msk [vmem:[%s4 + $0x8] sm:$0x1] %vm289, %v484
    %517 = vst.msk [vmem:[%s4 + $0xc] sm:$0x1] %vm289, %v485
    %518 = vst.msk [vmem:[%s4 + $0x10] sm:$0x1] %vm289, %v486
    %519 = vst.msk [vmem:[%s4 + $0x14] sm:$0x1] %vm289, %v487
    %520 = vst.msk [vmem:[%s4 + $0x18] sm:$0x1] %vm289, %v488
    %521 = vst.msk [vmem:[%s4 + $0x1c] sm:$0x1] %vm289, %v489
    %522 = vst.msk [vmem:[%s4 + $0x20] sm:$0x1] %vm289, %v490
    %523 = vst.msk [vmem:[%s4 + $0x24] sm:$0x1] %vm289, %v491
    %524 = vst.msk [vmem:[%s4 + $0x28] sm:$0x1] %vm289, %v492
    %525 = vst.msk [vmem:[%s4 + $0x2c] sm:$0x1] %vm289, %v493
    %526 = vst.msk [vmem:[%s4 + $0x30] sm:$0x1] %vm289, %v494
    %527 = vst.msk [vmem:[%s4 + $0x34] sm:$0x1] %vm289, %v495
    %528 = vst.msk [vmem:[%s4 + $0x38] sm:$0x1] %vm289, %v496
    %529 = vst.msk [vmem:[%s4 + $0x3c] sm:$0x1] %vm289, %v497
    %530 = vst.msk [vmem:[%s4 + $0x40] sm:$0x1] %vm289, %v498
    %531 = vst.msk [vmem:[%s4 + $0x44] sm:$0x1] %vm289, %v499
    %532 = vst.msk [vmem:[%s4 + $0x48] sm:$0x1] %vm289, %v500
    %533 = vst.msk [vmem:[%s4 + $0x4c] sm:$0x1] %vm289, %v501
    %534 = vst.msk [vmem:[%s4 + $0x50] sm:$0x1] %vm289, %v502
    %535 = vst.msk [vmem:[%s4 + $0x54] sm:$0x1] %vm289, %v503
    %536 = vst.msk [vmem:[%s4 + $0x58] sm:$0x1] %vm289, %v504
    %537 = vst.msk [vmem:[%s4 + $0x5c] sm:$0x1] %vm289, %v505
    %538 = vst.msk [vmem:[%s4 + $0x60] sm:$0x1] %vm289, %v506
    %539 = vst.msk [vmem:[%s4 + $0x64] sm:$0x1] %vm289, %v507
    %540 = vst.msk [vmem:[%s4 + $0x68] sm:$0x1] %vm289, %v508
    %541 = vst.msk [vmem:[%s4 + $0x6c] sm:$0x1] %vm289, %v509
    %542 = vst.msk [vmem:[%s4 + $0x70] sm:$0x1] %vm289, %v510
    %543 = vst.msk [vmem:[%s4 + $0x74] sm:$0x1] %vm289, %v511
    %544 = vst.msk [vmem:[%s4 + $0x78] sm:$0x1] %vm289, %v512
    %545 = vst.msk [vmem:[%s4 + $0x7c] sm:$0x1] %vm289, %v513
    %v546 = vrot.slane %v129, 1
    %v547 = vrot.slane %v130, 1
    %v548 = vrot.slane %v131, 1
    %v549 = vrot.slane %v132, 1
    %v550 = vrot.slane %v133, 1
    %v551 = vrot.slane %v134, 1
    %v552 = vrot.slane %v135, 1
    %v553 = vrot.slane %v136, 1
    %v554 = vrot.slane %v137, 1
    %v555 = vrot.slane %v138, 1
    %v556 = vrot.slane %v139, 1
    %v557 = vrot.slane %v140, 1
    %v558 = vrot.slane %v141, 1
    %v559 = vrot.slane %v142, 1
    %v560 = vrot.slane %v143, 1
    %v561 = vrot.slane %v144, 1
    %v562 = vrot.slane %v145, 1
    %v563 = vrot.slane %v146, 1
    %v564 = vrot.slane %v147, 1
    %v565 = vrot.slane %v148, 1
    %v566 = vrot.slane %v149, 1
    %v567 = vrot.slane %v150, 1
    %v568 = vrot.slane %v151, 1
    %v569 = vrot.slane %v152, 1
    %v570 = vrot.slane %v153, 1
    %v571 = vrot.slane %v154, 1
    %v572 = vrot.slane %v155, 1
    %v573 = vrot.slane %v156, 1
    %v574 = vrot.slane %v157, 1
    %v575 = vrot.slane %v158, 1
    %v576 = vrot.slane %v159, 1
    %v577 = vrot.slane %v160, 1
    %v610 = vadd.f32 %v96, %v546
    %v611 = vadd.f32 %v97, %v547
    %v612 = vadd.f32 %v98, %v548
    %v613 = vadd.f32 %v99, %v549
    %v614 = vadd.f32 %v100, %v550
    %v615 = vadd.f32 %v101, %v551
    %v616 = vadd.f32 %v102, %v552
    %v617 = vadd.f32 %v103, %v553
    %v618 = vadd.f32 %v104, %v554
    %v619 = vadd.f32 %v105, %v555
    %v620 = vadd.f32 %v106, %v556
    %v621 = vadd.f32 %v107, %v557
    %v622 = vadd.f32 %v108, %v558
    %v623 = vadd.f32 %v109, %v559
    %v624 = vadd.f32 %v110, %v560
    %v625 = vadd.f32 %v111, %v561
    %v626 = vadd.f32 %v112, %v562
    %v627 = vadd.f32 %v113, %v563
    %v628 = vadd.f32 %v114, %v564
    %v629 = vadd.f32 %v115, %v565
    %v630 = vadd.f32 %v116, %v566
    %v631 = vadd.f32 %v117, %v567
    %v632 = vadd.f32 %v118, %v568
    %v633 = vadd.f32 %v119, %v569
    %v634 = vadd.f32 %v120, %v570
    %v635 = vadd.f32 %v121, %v571
    %v636 = vadd.f32 %v122, %v572
    %v637 = vadd.f32 %v123, %v573
    %v638 = vadd.f32 %v124, %v574
    %v639 = vadd.f32 %v125, %v575
    %v640 = vadd.f32 %v126, %v576
    %v641 = vadd.f32 %v127, %v577
    %vm642 = vcmask 58369
    %643 = vst.msk [vmem:[%s3] sm:$0x2] %vm642, %v610
    %644 = vst.msk [vmem:[%s3 + $0x4] sm:$0x2] %vm642, %v611
    %645 = vst.msk [vmem:[%s3 + $0x8] sm:$0x2] %vm642, %v612
    %646 = vst.msk [vmem:[%s3 + $0xc] sm:$0x2] %vm642, %v613
    %647 = vst.msk [vmem:[%s3 + $0x10] sm:$0x2] %vm642, %v614
    %648 = vst.msk [vmem:[%s3 + $0x14] sm:$0x2] %vm642, %v615
    %649 = vst.msk [vmem:[%s3 + $0x18] sm:$0x2] %vm642, %v616
    %650 = vst.msk [vmem:[%s3 + $0x1c] sm:$0x2] %vm642, %v617
    %651 = vst.msk [vmem:[%s3 + $0x20] sm:$0x2] %vm642, %v618
    %652 = vst.msk [vmem:[%s3 + $0x24] sm:$0x2] %vm642, %v619
    %653 = vst.msk [vmem:[%s3 + $0x28] sm:$0x2] %vm642, %v620
    %654 = vst.msk [vmem:[%s3 + $0x2c] sm:$0x2] %vm642, %v621
    %655 = vst.msk [vmem:[%s3 + $0x30] sm:$0x2] %vm642, %v622
    %656 = vst.msk [vmem:[%s3 + $0x34] sm:$0x2] %vm642, %v623
    %657 = vst.msk [vmem:[%s3 + $0x38] sm:$0x2] %vm642, %v624
    %658 = vst.msk [vmem:[%s3 + $0x3c] sm:$0x2] %vm642, %v625
    %659 = vst.msk [vmem:[%s3 + $0x40] sm:$0x2] %vm642, %v626
    %660 = vst.msk [vmem:[%s3 + $0x44] sm:$0x2] %vm642, %v627
    %661 = vst.msk [vmem:[%s3 + $0x48] sm:$0x2] %vm642, %v628
    %662 = vst.msk [vmem:[%s3 + $0x4c] sm:$0x2] %vm642, %v629
    %663 = vst.msk [vmem:[%s3 + $0x50] sm:$0x2] %vm642, %v630
    %664 = vst.msk [vmem:[%s3 + $0x54] sm:$0x2] %vm642, %v631
    %665 = vst.msk [vmem:[%s3 + $0x58] sm:$0x2] %vm642, %v632
    %666 = vst.msk [vmem:[%s3 + $0x5c] sm:$0x2] %vm642, %v633
    %667 = vst.msk [vmem:[%s3 + $0x60] sm:$0x2] %vm642, %v634
    %668 = vst.msk [vmem:[%s3 + $0x64] sm:$0x2] %vm642, %v635
    %669 = vst.msk [vmem:[%s3 + $0x68] sm:$0x2] %vm642, %v636
    %670 = vst.msk [vmem:[%s3 + $0x6c] sm:$0x2] %vm642, %v637
    %671 = vst.msk [vmem:[%s3 + $0x70] sm:$0x2] %vm642, %v638
    %672 = vst.msk [vmem:[%s3 + $0x74] sm:$0x2] %vm642, %v639
    %673 = vst.msk [vmem:[%s3 + $0x78] sm:$0x2] %vm642, %v640
    %674 = vst.msk [vmem:[%s3 + $0x7c] sm:$0x2] %vm642, %v641
    %v675 = vrot.slane %v354, 1
    %v676 = vrot.slane %v355, 1
    %v677 = vrot.slane %v356, 1
    %v678 = vrot.slane %v357, 1
    %v679 = vrot.slane %v358, 1
    %v680 = vrot.slane %v359, 1
    %v681 = vrot.slane %v360, 1
    %v682 = vrot.slane %v361, 1
    %v683 = vrot.slane %v362, 1
    %v684 = vrot.slane %v363, 1
    %v685 = vrot.slane %v364, 1
    %v686 = vrot.slane %v365, 1
    %v687 = vrot.slane %v366, 1
    %v688 = vrot.slane %v367, 1
    %v689 = vrot.slane %v368, 1
    %v690 = vrot.slane %v369, 1
    %v691 = vrot.slane %v370, 1
    %v692 = vrot.slane %v371, 1
    %v693 = vrot.slane %v372, 1
    %v694 = vrot.slane %v373, 1
    %v695 = vrot.slane %v374, 1
    %v696 = vrot.slane %v375, 1
    %v697 = vrot.slane %v376, 1
    %v698 = vrot.slane %v377, 1
    %v699 = vrot.slane %v378, 1
    %v700 = vrot.slane %v379, 1
    %v701 = vrot.slane %v380, 1
    %v702 = vrot.slane %v381, 1
    %v703 = vrot.slane %v382, 1
    %v704 = vrot.slane %v383, 1
    %v705 = vrot.slane %v384, 1
    %v706 = vrot.slane %v385, 1
    %v739 = vsub.f32 %v322, %v675
    %v740 = vsub.f32 %v323, %v676
    %v741 = vsub.f32 %v324, %v677
    %v742 = vsub.f32 %v325, %v678
    %v743 = vsub.f32 %v326, %v679
    %v744 = vsub.f32 %v327, %v680
    %v745 = vsub.f32 %v328, %v681
    %v746 = vsub.f32 %v329, %v682
    %v747 = vsub.f32 %v330, %v683
    %v748 = vsub.f32 %v331, %v684
    %v749 = vsub.f32 %v332, %v685
    %v750 = vsub.f32 %v333, %v686
    %v751 = vsub.f32 %v334, %v687
    %v752 = vsub.f32 %v335, %v688
    %v753 = vsub.f32 %v336, %v689
    %v754 = vsub.f32 %v337, %v690
    %v755 = vsub.f32 %v338, %v691
    %v756 = vsub.f32 %v339, %v692
    %v757 = vsub.f32 %v340, %v693
    %v758 = vsub.f32 %v341, %v694
    %v759 = vsub.f32 %v342, %v695
    %v760 = vsub.f32 %v343, %v696
    %v761 = vsub.f32 %v344, %v697
    %v762 = vsub.f32 %v345, %v698
    %v763 = vsub.f32 %v346, %v699
    %v764 = vsub.f32 %v347, %v700
    %v765 = vsub.f32 %v348, %v701
    %v766 = vsub.f32 %v349, %v702
    %v767 = vsub.f32 %v350, %v703
    %v768 = vsub.f32 %v351, %v704
    %v769 = vsub.f32 %v352, %v705
    %v770 = vsub.f32 %v353, %v706
    %771 = vst.msk [vmem:[%s4] sm:$0x2] %vm642, %v739
    %772 = vst.msk [vmem:[%s4 + $0x4] sm:$0x2] %vm642, %v740
    %773 = vst.msk [vmem:[%s4 + $0x8] sm:$0x2] %vm642, %v741
    %774 = vst.msk [vmem:[%s4 + $0xc] sm:$0x2] %vm642, %v742
    %775 = vst.msk [vmem:[%s4 + $0x10] sm:$0x2] %vm642, %v743
    %776 = vst.msk [vmem:[%s4 + $0x14] sm:$0x2] %vm642, %v744
    %777 = vst.msk [vmem:[%s4 + $0x18] sm:$0x2] %vm642, %v745
    %778 = vst.msk [vmem:[%s4 + $0x1c] sm:$0x2] %vm642, %v746
    %779 = vst.msk [vmem:[%s4 + $0x20] sm:$0x2] %vm642, %v747
    %780 = vst.msk [vmem:[%s4 + $0x24] sm:$0x2] %vm642, %v748
    %781 = vst.msk [vmem:[%s4 + $0x28] sm:$0x2] %vm642, %v749
    %782 = vst.msk [vmem:[%s4 + $0x2c] sm:$0x2] %vm642, %v750
    %783 = vst.msk [vmem:[%s4 + $0x30] sm:$0x2] %vm642, %v751
    %784 = vst.msk [vmem:[%s4 + $0x34] sm:$0x2] %vm642, %v752
    %785 = vst.msk [vmem:[%s4 + $0x38] sm:$0x2] %vm642, %v753
    %786 = vst.msk [vmem:[%s4 + $0x3c] sm:$0x2] %vm642, %v754
    %787 = vst.msk [vmem:[%s4 + $0x40] sm:$0x2] %vm642, %v755
    %788 = vst.msk [vmem:[%s4 + $0x44] sm:$0x2] %vm642, %v756
    %789 = vst.msk [vmem:[%s4 + $0x48] sm:$0x2] %vm642, %v757
    %790 = vst.msk [vmem:[%s4 + $0x4c] sm:$0x2] %vm642, %v758
    %791 = vst.msk [vmem:[%s4 + $0x50] sm:$0x2] %vm642, %v759
    %792 = vst.msk [vmem:[%s4 + $0x54] sm:$0x2] %vm642, %v760
    %793 = vst.msk [vmem:[%s4 + $0x58] sm:$0x2] %vm642, %v761
    %794 = vst.msk [vmem:[%s4 + $0x5c] sm:$0x2] %vm642, %v762
    %795 = vst.msk [vmem:[%s4 + $0x60] sm:$0x2] %vm642, %v763
    %796 = vst.msk [vmem:[%s4 + $0x64] sm:$0x2] %vm642, %v764
    %797 = vst.msk [vmem:[%s4 + $0x68] sm:$0x2] %vm642, %v765
    %798 = vst.msk [vmem:[%s4 + $0x6c] sm:$0x2] %vm642, %v766
    %799 = vst.msk [vmem:[%s4 + $0x70] sm:$0x2] %vm642, %v767
    %800 = vst.msk [vmem:[%s4 + $0x74] sm:$0x2] %vm642, %v768
    %801 = vst.msk [vmem:[%s4 + $0x78] sm:$0x2] %vm642, %v769
    %802 = vst.msk [vmem:[%s4 + $0x7c] sm:$0x2] %vm642, %v770
    %v803 = vrot.slane %v129, 7
    %v804 = vrot.slane %v130, 7
    %v805 = vrot.slane %v131, 7
    %v806 = vrot.slane %v132, 7
    %v807 = vrot.slane %v133, 7
    %v808 = vrot.slane %v134, 7
    %v809 = vrot.slane %v135, 7
    %v810 = vrot.slane %v136, 7
    %v811 = vrot.slane %v137, 7
    %v812 = vrot.slane %v138, 7
    %v813 = vrot.slane %v139, 7
    %v814 = vrot.slane %v140, 7
    %v815 = vrot.slane %v141, 7
    %v816 = vrot.slane %v142, 7
    %v817 = vrot.slane %v143, 7
    %v818 = vrot.slane %v144, 7
    %v819 = vrot.slane %v145, 7
    %v820 = vrot.slane %v146, 7
    %v821 = vrot.slane %v147, 7
    %v822 = vrot.slane %v148, 7
    %v823 = vrot.slane %v149, 7
    %v824 = vrot.slane %v150, 7
    %v825 = vrot.slane %v151, 7
    %v826 = vrot.slane %v152, 7
    %v827 = vrot.slane %v153, 7
    %v828 = vrot.slane %v154, 7
    %v829 = vrot.slane %v155, 7
    %v830 = vrot.slane %v156, 7
    %v831 = vrot.slane %v157, 7
    %v832 = vrot.slane %v158, 7
    %v833 = vrot.slane %v159, 7
    %v834 = vrot.slane %v160, 7
    %v867 = vadd.f32 %v96, %v803
    %v868 = vadd.f32 %v97, %v804
    %v869 = vadd.f32 %v98, %v805
    %v870 = vadd.f32 %v99, %v806
    %v871 = vadd.f32 %v100, %v807
    %v872 = vadd.f32 %v101, %v808
    %v873 = vadd.f32 %v102, %v809
    %v874 = vadd.f32 %v103, %v810
    %v875 = vadd.f32 %v104, %v811
    %v876 = vadd.f32 %v105, %v812
    %v877 = vadd.f32 %v106, %v813
    %v878 = vadd.f32 %v107, %v814
    %v879 = vadd.f32 %v108, %v815
    %v880 = vadd.f32 %v109, %v816
    %v881 = vadd.f32 %v110, %v817
    %v882 = vadd.f32 %v111, %v818
    %v883 = vadd.f32 %v112, %v819
    %v884 = vadd.f32 %v113, %v820
    %v885 = vadd.f32 %v114, %v821
    %v886 = vadd.f32 %v115, %v822
    %v887 = vadd.f32 %v116, %v823
    %v888 = vadd.f32 %v117, %v824
    %v889 = vadd.f32 %v118, %v825
    %v890 = vadd.f32 %v119, %v826
    %v891 = vadd.f32 %v120, %v827
    %v892 = vadd.f32 %v121, %v828
    %v893 = vadd.f32 %v122, %v829
    %v894 = vadd.f32 %v123, %v830
    %v895 = vadd.f32 %v124, %v831
    %v896 = vadd.f32 %v125, %v832
    %v897 = vadd.f32 %v126, %v833
    %v898 = vadd.f32 %v127, %v834
    %vm899 = vcmask 59394
    %900 = vst.msk [vmem:[%s3] sm:$0x4] %vm899, %v867
    %901 = vst.msk [vmem:[%s3 + $0x4] sm:$0x4] %vm899, %v868
    %902 = vst.msk [vmem:[%s3 + $0x8] sm:$0x4] %vm899, %v869
    %903 = vst.msk [vmem:[%s3 + $0xc] sm:$0x4] %vm899, %v870
    %904 = vst.msk [vmem:[%s3 + $0x10] sm:$0x4] %vm899, %v871
    %905 = vst.msk [vmem:[%s3 + $0x14] sm:$0x4] %vm899, %v872
    %906 = vst.msk [vmem:[%s3 + $0x18] sm:$0x4] %vm899, %v873
    %907 = vst.msk [vmem:[%s3 + $0x1c] sm:$0x4] %vm899, %v874
    %908 = vst.msk [vmem:[%s3 + $0x20] sm:$0x4] %vm899, %v875
    %909 = vst.msk [vmem:[%s3 + $0x24] sm:$0x4] %vm899, %v876
    %910 = vst.msk [vmem:[%s3 + $0x28] sm:$0x4] %vm899, %v877
    %911 = vst.msk [vmem:[%s3 + $0x2c] sm:$0x4] %vm899, %v878
    %912 = vst.msk [vmem:[%s3 + $0x30] sm:$0x4] %vm899, %v879
    %913 = vst.msk [vmem:[%s3 + $0x34] sm:$0x4] %vm899, %v880
    %914 = vst.msk [vmem:[%s3 + $0x38] sm:$0x4] %vm899, %v881
    %915 = vst.msk [vmem:[%s3 + $0x3c] sm:$0x4] %vm899, %v882
    %916 = vst.msk [vmem:[%s3 + $0x40] sm:$0x4] %vm899, %v883
    %917 = vst.msk [vmem:[%s3 + $0x44] sm:$0x4] %vm899, %v884
    %918 = vst.msk [vmem:[%s3 + $0x48] sm:$0x4] %vm899, %v885
    %919 = vst.msk [vmem:[%s3 + $0x4c] sm:$0x4] %vm899, %v886
    %920 = vst.msk [vmem:[%s3 + $0x50] sm:$0x4] %vm899, %v887
    %921 = vst.msk [vmem:[%s3 + $0x54] sm:$0x4] %vm899, %v888
    %922 = vst.msk [vmem:[%s3 + $0x58] sm:$0x4] %vm899, %v889
    %923 = vst.msk [vmem:[%s3 + $0x5c] sm:$0x4] %vm899, %v890
    %924 = vst.msk [vmem:[%s3 + $0x60] sm:$0x4] %vm899, %v891
    %925 = vst.msk [vmem:[%s3 + $0x64] sm:$0x4] %vm899, %v892
    %926 = vst.msk [vmem:[%s3 + $0x68] sm:$0x4] %vm899, %v893
    %927 = vst.msk [vmem:[%s3 + $0x6c] sm:$0x4] %vm899, %v894
    %928 = vst.msk [vmem:[%s3 + $0x70] sm:$0x4] %vm899, %v895
    %929 = vst.msk [vmem:[%s3 + $0x74] sm:$0x4] %vm899, %v896
    %930 = vst.msk [vmem:[%s3 + $0x78] sm:$0x4] %vm899, %v897
    %931 = vst.msk [vmem:[%s3 + $0x7c] sm:$0x4] %vm899, %v898
    %v932 = vrot.slane %v354, 7
    %v933 = vrot.slane %v355, 7
    %v934 = vrot.slane %v356, 7
    %v935 = vrot.slane %v357, 7
    %v936 = vrot.slane %v358, 7
    %v937 = vrot.slane %v359, 7
    %v938 = vrot.slane %v360, 7
    %v939 = vrot.slane %v361, 7
    %v940 = vrot.slane %v362, 7
    %v941 = vrot.slane %v363, 7
    %v942 = vrot.slane %v364, 7
    %v943 = vrot.slane %v365, 7
    %v944 = vrot.slane %v366, 7
    %v945 = vrot.slane %v367, 7
    %v946 = vrot.slane %v368, 7
    %v947 = vrot.slane %v369, 7
    %v948 = vrot.slane %v370, 7
    %v949 = vrot.slane %v371, 7
    %v950 = vrot.slane %v372, 7
    %v951 = vrot.slane %v373, 7
    %v952 = vrot.slane %v374, 7
    %v953 = vrot.slane %v375, 7
    %v954 = vrot.slane %v376, 7
    %v955 = vrot.slane %v377, 7
    %v956 = vrot.slane %v378, 7
    %v957 = vrot.slane %v379, 7
    %v958 = vrot.slane %v380, 7
    %v959 = vrot.slane %v381, 7
    %v960 = vrot.slane %v382, 7
    %v961 = vrot.slane %v383, 7
    %v962 = vrot.slane %v384, 7
    %v963 = vrot.slane %v385, 7
    %v996 = vsub.f32 %v322, %v932
    %v997 = vsub.f32 %v323, %v933
    %v998 = vsub.f32 %v324, %v934
    %v999 = vsub.f32 %v325, %v935
    %v1000 = vsub.f32 %v326, %v936
    %v1001 = vsub.f32 %v327, %v937
    %v1002 = vsub.f32 %v328, %v938
    %v1003 = vsub.f32 %v329, %v939
    %v1004 = vsub.f32 %v330, %v940
    %v1005 = vsub.f32 %v331, %v941
    %v1006 = vsub.f32 %v332, %v942
    %v1007 = vsub.f32 %v333, %v943
    %v1008 = vsub.f32 %v334, %v944
    %v1009 = vsub.f32 %v335, %v945
    %v1010 = vsub.f32 %v336, %v946
    %v1011 = vsub.f32 %v337, %v947
    %v1012 = vsub.f32 %v338, %v948
    %v1013 = vsub.f32 %v339, %v949
    %v1014 = vsub.f32 %v340, %v950
    %v1015 = vsub.f32 %v341, %v951
    %v1016 = vsub.f32 %v342, %v952
    %v1017 = vsub.f32 %v343, %v953
    %v1018 = vsub.f32 %v344, %v954
    %v1019 = vsub.f32 %v345, %v955
    %v1020 = vsub.f32 %v346, %v956
    %v1021 = vsub.f32 %v347, %v957
    %v1022 = vsub.f32 %v348, %v958
    %v1023 = vsub.f32 %v349, %v959
    %v1024 = vsub.f32 %v350, %v960
    %v1025 = vsub.f32 %v351, %v961
    %v1026 = vsub.f32 %v352, %v962
    %v1027 = vsub.f32 %v353, %v963
    %1028 = vst.msk [vmem:[%s4] sm:$0x4] %vm899, %v996
    %1029 = vst.msk [vmem:[%s4 + $0x4] sm:$0x4] %vm899, %v997
    %1030 = vst.msk [vmem:[%s4 + $0x8] sm:$0x4] %vm899, %v998
    %1031 = vst.msk [vmem:[%s4 + $0xc] sm:$0x4] %vm899, %v999
    %1032 = vst.msk [vmem:[%s4 + $0x10] sm:$0x4] %vm899, %v1000
    %1033 = vst.msk [vmem:[%s4 + $0x14] sm:$0x4] %vm899, %v1001
    %1034 = vst.msk [vmem:[%s4 + $0x18] sm:$0x4] %vm899, %v1002
    %1035 = vst.msk [vmem:[%s4 + $0x1c] sm:$0x4] %vm899, %v1003
    %1036 = vst.msk [vmem:[%s4 + $0x20] sm:$0x4] %vm899, %v1004
    %1037 = vst.msk [vmem:[%s4 + $0x24] sm:$0x4] %vm899, %v1005
    %1038 = vst.msk [vmem:[%s4 + $0x28] sm:$0x4] %vm899, %v1006
    %1039 = vst.msk [vmem:[%s4 + $0x2c] sm:$0x4] %vm899, %v1007
    %1040 = vst.msk [vmem:[%s4 + $0x30] sm:$0x4] %vm899, %v1008
    %1041 = vst.msk [vmem:[%s4 + $0x34] sm:$0x4] %vm899, %v1009
    %1042 = vst.msk [vmem:[%s4 + $0x38] sm:$0x4] %vm899, %v1010
    %1043 = vst.msk [vmem:[%s4 + $0x3c] sm:$0x4] %vm899, %v1011
    %1044 = vst.msk [vmem:[%s4 + $0x40] sm:$0x4] %vm899, %v1012
    %1045 = vst.msk [vmem:[%s4 + $0x44] sm:$0x4] %vm899, %v1013
    %1046 = vst.msk [vmem:[%s4 + $0x48] sm:$0x4] %vm899, %v1014
    %1047 = vst.msk [vmem:[%s4 + $0x4c] sm:$0x4] %vm899, %v1015
    %1048 = vst.msk [vmem:[%s4 + $0x50] sm:$0x4] %vm899, %v1016
    %1049 = vst.msk [vmem:[%s4 + $0x54] sm:$0x4] %vm899, %v1017
    %1050 = vst.msk [vmem:[%s4 + $0x58] sm:$0x4] %vm899, %v1018
    %1051 = vst.msk [vmem:[%s4 + $0x5c] sm:$0x4] %vm899, %v1019
    %1052 = vst.msk [vmem:[%s4 + $0x60] sm:$0x4] %vm899, %v1020
    %1053 = vst.msk [vmem:[%s4 + $0x64] sm:$0x4] %vm899, %v1021
    %1054 = vst.msk [vmem:[%s4 + $0x68] sm:$0x4] %vm899, %v1022
    %1055 = vst.msk [vmem:[%s4 + $0x6c] sm:$0x4] %vm899, %v1023
    %1056 = vst.msk [vmem:[%s4 + $0x70] sm:$0x4] %vm899, %v1024
    %1057 = vst.msk [vmem:[%s4 + $0x74] sm:$0x4] %vm899, %v1025
    %1058 = vst.msk [vmem:[%s4 + $0x78] sm:$0x4] %vm899, %v1026
    %1059 = vst.msk [vmem:[%s4 + $0x7c] sm:$0x4] %vm899, %v1027
    %v1060 = vrot.slane %v129, 5
    %v1061 = vrot.slane %v130, 5
    %v1062 = vrot.slane %v131, 5
    %v1063 = vrot.slane %v132, 5
    %v1064 = vrot.slane %v133, 5
    %v1065 = vrot.slane %v134, 5
    %v1066 = vrot.slane %v135, 5
    %v1067 = vrot.slane %v136, 5
    %v1068 = vrot.slane %v137, 5
    %v1069 = vrot.slane %v138, 5
    %v1070 = vrot.slane %v139, 5
    %v1071 = vrot.slane %v140, 5
    %v1072 = vrot.slane %v141, 5
    %v1073 = vrot.slane %v142, 5
    %v1074 = vrot.slane %v143, 5
    %v1075 = vrot.slane %v144, 5
    %v1076 = vrot.slane %v145, 5
    %v1077 = vrot.slane %v146, 5
    %v1078 = vrot.slane %v147, 5
    %v1079 = vrot.slane %v148, 5
    %v1080 = vrot.slane %v149, 5
    %v1081 = vrot.slane %v150, 5
    %v1082 = vrot.slane %v151, 5
    %v1083 = vrot.slane %v152, 5
    %v1084 = vrot.slane %v153, 5
    %v1085 = vrot.slane %v154, 5
    %v1086 = vrot.slane %v155, 5
    %v1087 = vrot.slane %v156, 5
    %v1088 = vrot.slane %v157, 5
    %v1089 = vrot.slane %v158, 5
    %v1090 = vrot.slane %v159, 5
    %v1091 = vrot.slane %v160, 5
    %v1124 = vadd.f32 %v96, %v1060
    %v1125 = vadd.f32 %v97, %v1061
    %v1126 = vadd.f32 %v98, %v1062
    %v1127 = vadd.f32 %v99, %v1063
    %v1128 = vadd.f32 %v100, %v1064
    %v1129 = vadd.f32 %v101, %v1065
    %v1130 = vadd.f32 %v102, %v1066
    %v1131 = vadd.f32 %v103, %v1067
    %v1132 = vadd.f32 %v104, %v1068
    %v1133 = vadd.f32 %v105, %v1069
    %v1134 = vadd.f32 %v106, %v1070
    %v1135 = vadd.f32 %v107, %v1071
    %v1136 = vadd.f32 %v108, %v1072
    %v1137 = vadd.f32 %v109, %v1073
    %v1138 = vadd.f32 %v110, %v1074
    %v1139 = vadd.f32 %v111, %v1075
    %v1140 = vadd.f32 %v112, %v1076
    %v1141 = vadd.f32 %v113, %v1077
    %v1142 = vadd.f32 %v114, %v1078
    %v1143 = vadd.f32 %v115, %v1079
    %v1144 = vadd.f32 %v116, %v1080
    %v1145 = vadd.f32 %v117, %v1081
    %v1146 = vadd.f32 %v118, %v1082
    %v1147 = vadd.f32 %v119, %v1083
    %v1148 = vadd.f32 %v120, %v1084
    %v1149 = vadd.f32 %v121, %v1085
    %v1150 = vadd.f32 %v122, %v1086
    %v1151 = vadd.f32 %v123, %v1087
    %v1152 = vadd.f32 %v124, %v1088
    %v1153 = vadd.f32 %v125, %v1089
    %v1154 = vadd.f32 %v126, %v1090
    %v1155 = vadd.f32 %v127, %v1091
    %vm1156 = vcmask 60419
    %1157 = vst.msk [vmem:[%s3] sm:$0x8] %vm1156, %v1124
    %1158 = vst.msk [vmem:[%s3 + $0x4] sm:$0x8] %vm1156, %v1125
    %1159 = vst.msk [vmem:[%s3 + $0x8] sm:$0x8] %vm1156, %v1126
    %1160 = vst.msk [vmem:[%s3 + $0xc] sm:$0x8] %vm1156, %v1127
    %1161 = vst.msk [vmem:[%s3 + $0x10] sm:$0x8] %vm1156, %v1128
    %1162 = vst.msk [vmem:[%s3 + $0x14] sm:$0x8] %vm1156, %v1129
    %1163 = vst.msk [vmem:[%s3 + $0x18] sm:$0x8] %vm1156, %v1130
    %1164 = vst.msk [vmem:[%s3 + $0x1c] sm:$0x8] %vm1156, %v1131
    %1165 = vst.msk [vmem:[%s3 + $0x20] sm:$0x8] %vm1156, %v1132
    %1166 = vst.msk [vmem:[%s3 + $0x24] sm:$0x8] %vm1156, %v1133
    %1167 = vst.msk [vmem:[%s3 + $0x28] sm:$0x8] %vm1156, %v1134
    %1168 = vst.msk [vmem:[%s3 + $0x2c] sm:$0x8] %vm1156, %v1135
    %1169 = vst.msk [vmem:[%s3 + $0x30] sm:$0x8] %vm1156, %v1136
    %1170 = vst.msk [vmem:[%s3 + $0x34] sm:$0x8] %vm1156, %v1137
    %1171 = vst.msk [vmem:[%s3 + $0x38] sm:$0x8] %vm1156, %v1138
    %1172 = vst.msk [vmem:[%s3 + $0x3c] sm:$0x8] %vm1156, %v1139
    %1173 = vst.msk [vmem:[%s3 + $0x40] sm:$0x8] %vm1156, %v1140
    %1174 = vst.msk [vmem:[%s3 + $0x44] sm:$0x8] %vm1156, %v1141
    %1175 = vst.msk [vmem:[%s3 + $0x48] sm:$0x8] %vm1156, %v1142
    %1176 = vst.msk [vmem:[%s3 + $0x4c] sm:$0x8] %vm1156, %v1143
    %1177 = vst.msk [vmem:[%s3 + $0x50] sm:$0x8] %vm1156, %v1144
    %1178 = vst.msk [vmem:[%s3 + $0x54] sm:$0x8] %vm1156, %v1145
    %1179 = vst.msk [vmem:[%s3 + $0x58] sm:$0x8] %vm1156, %v1146
    %1180 = vst.msk [vmem:[%s3 + $0x5c] sm:$0x8] %vm1156, %v1147
    %1181 = vst.msk [vmem:[%s3 + $0x60] sm:$0x8] %vm1156, %v1148
    %1182 = vst.msk [vmem:[%s3 + $0x64] sm:$0x8] %vm1156, %v1149
    %1183 = vst.msk [vmem:[%s3 + $0x68] sm:$0x8] %vm1156, %v1150
    %1184 = vst.msk [vmem:[%s3 + $0x6c] sm:$0x8] %vm1156, %v1151
    %1185 = vst.msk [vmem:[%s3 + $0x70] sm:$0x8] %vm1156, %v1152
    %1186 = vst.msk [vmem:[%s3 + $0x74] sm:$0x8] %vm1156, %v1153
    %1187 = vst.msk [vmem:[%s3 + $0x78] sm:$0x8] %vm1156, %v1154
    %1188 = vst.msk [vmem:[%s3 + $0x7c] sm:$0x8] %vm1156, %v1155
    %v1189 = vrot.slane %v354, 5
    %v1190 = vrot.slane %v355, 5
    %v1191 = vrot.slane %v356, 5
    %v1192 = vrot.slane %v357, 5
    %v1193 = vrot.slane %v358, 5
    %v1194 = vrot.slane %v359, 5
    %v1195 = vrot.slane %v360, 5
    %v1196 = vrot.slane %v361, 5
    %v1197 = vrot.slane %v362, 5
    %v1198 = vrot.slane %v363, 5
    %v1199 = vrot.slane %v364, 5
    %v1200 = vrot.slane %v365, 5
    %v1201 = vrot.slane %v366, 5
    %v1202 = vrot.slane %v367, 5
    %v1203 = vrot.slane %v368, 5
    %v1204 = vrot.slane %v369, 5
    %v1205 = vrot.slane %v370, 5
    %v1206 = vrot.slane %v371, 5
    %v1207 = vrot.slane %v372, 5
    %v1208 = vrot.slane %v373, 5
    %v1209 = vrot.slane %v374, 5
    %v1210 = vrot.slane %v375, 5
    %v1211 = vrot.slane %v376, 5
    %v1212 = vrot.slane %v377, 5
    %v1213 = vrot.slane %v378, 5
    %v1214 = vrot.slane %v379, 5
    %v1215 = vrot.slane %v380, 5
    %v1216 = vrot.slane %v381, 5
    %v1217 = vrot.slane %v382, 5
    %v1218 = vrot.slane %v383, 5
    %v1219 = vrot.slane %v384, 5
    %v1220 = vrot.slane %v385, 5
    %v1253 = vsub.f32 %v322, %v1189
    %v1254 = vsub.f32 %v323, %v1190
    %v1255 = vsub.f32 %v324, %v1191
    %v1256 = vsub.f32 %v325, %v1192
    %v1257 = vsub.f32 %v326, %v1193
    %v1258 = vsub.f32 %v327, %v1194
    %v1259 = vsub.f32 %v328, %v1195
    %v1260 = vsub.f32 %v329, %v1196
    %v1261 = vsub.f32 %v330, %v1197
    %v1262 = vsub.f32 %v331, %v1198
    %v1263 = vsub.f32 %v332, %v1199
    %v1264 = vsub.f32 %v333, %v1200
    %v1265 = vsub.f32 %v334, %v1201
    %v1266 = vsub.f32 %v335, %v1202
    %v1267 = vsub.f32 %v336, %v1203
    %v1268 = vsub.f32 %v337, %v1204
    %v1269 = vsub.f32 %v338, %v1205
    %v1270 = vsub.f32 %v339, %v1206
    %v1271 = vsub.f32 %v340, %v1207
    %v1272 = vsub.f32 %v341, %v1208
    %v1273 = vsub.f32 %v342, %v1209
    %v1274 = vsub.f32 %v343, %v1210
    %v1275 = vsub.f32 %v344, %v1211
    %v1276 = vsub.f32 %v345, %v1212
    %v1277 = vsub.f32 %v346, %v1213
    %v1278 = vsub.f32 %v347, %v1214
    %v1279 = vsub.f32 %v348, %v1215
    %v1280 = vsub.f32 %v349, %v1216
    %v1281 = vsub.f32 %v350, %v1217
    %v1282 = vsub.f32 %v351, %v1218
    %v1283 = vsub.f32 %v352, %v1219
    %v1284 = vsub.f32 %v353, %v1220
    %1285 = vst.msk [vmem:[%s4] sm:$0x8] %vm1156, %v1253
    %1286 = vst.msk [vmem:[%s4 + $0x4] sm:$0x8] %vm1156, %v1254
    %1287 = vst.msk [vmem:[%s4 + $0x8] sm:$0x8] %vm1156, %v1255
    %1288 = vst.msk [vmem:[%s4 + $0xc] sm:$0x8] %vm1156, %v1256
    %1289 = vst.msk [vmem:[%s4 + $0x10] sm:$0x8] %vm1156, %v1257
    %1290 = vst.msk [vmem:[%s4 + $0x14] sm:$0x8] %vm1156, %v1258
    %1291 = vst.msk [vmem:[%s4 + $0x18] sm:$0x8] %vm1156, %v1259
    %1292 = vst.msk [vmem:[%s4 + $0x1c] sm:$0x8] %vm1156, %v1260
    %1293 = vst.msk [vmem:[%s4 + $0x20] sm:$0x8] %vm1156, %v1261
    %1294 = vst.msk [vmem:[%s4 + $0x24] sm:$0x8] %vm1156, %v1262
    %1295 = vst.msk [vmem:[%s4 + $0x28] sm:$0x8] %vm1156, %v1263
    %1296 = vst.msk [vmem:[%s4 + $0x2c] sm:$0x8] %vm1156, %v1264
    %1297 = vst.msk [vmem:[%s4 + $0x30] sm:$0x8] %vm1156, %v1265
    %1298 = vst.msk [vmem:[%s4 + $0x34] sm:$0x8] %vm1156, %v1266
    %1299 = vst.msk [vmem:[%s4 + $0x38] sm:$0x8] %vm1156, %v1267
    %1300 = vst.msk [vmem:[%s4 + $0x3c] sm:$0x8] %vm1156, %v1268
    %1301 = vst.msk [vmem:[%s4 + $0x40] sm:$0x8] %vm1156, %v1269
    %1302 = vst.msk [vmem:[%s4 + $0x44] sm:$0x8] %vm1156, %v1270
    %1303 = vst.msk [vmem:[%s4 + $0x48] sm:$0x8] %vm1156, %v1271
    %1304 = vst.msk [vmem:[%s4 + $0x4c] sm:$0x8] %vm1156, %v1272
    %1305 = vst.msk [vmem:[%s4 + $0x50] sm:$0x8] %vm1156, %v1273
    %1306 = vst.msk [vmem:[%s4 + $0x54] sm:$0x8] %vm1156, %v1274
    %1307 = vst.msk [vmem:[%s4 + $0x58] sm:$0x8] %vm1156, %v1275
    %1308 = vst.msk [vmem:[%s4 + $0x5c] sm:$0x8] %vm1156, %v1276
    %1309 = vst.msk [vmem:[%s4 + $0x60] sm:$0x8] %vm1156, %v1277
    %1310 = vst.msk [vmem:[%s4 + $0x64] sm:$0x8] %vm1156, %v1278
    %1311 = vst.msk [vmem:[%s4 + $0x68] sm:$0x8] %vm1156, %v1279
    %1312 = vst.msk [vmem:[%s4 + $0x6c] sm:$0x8] %vm1156, %v1280
    %1313 = vst.msk [vmem:[%s4 + $0x70] sm:$0x8] %vm1156, %v1281
    %1314 = vst.msk [vmem:[%s4 + $0x74] sm:$0x8] %vm1156, %v1282
    %1315 = vst.msk [vmem:[%s4 + $0x78] sm:$0x8] %vm1156, %v1283
    %1316 = vst.msk [vmem:[%s4 + $0x7c] sm:$0x8] %vm1156, %v1284
    // Predicated region
    $region18: #{tpu_custom_call.1} parent=1 // pred_check
      _
    $region19: #{tpu_custom_call.1} parent=1 // pred_check_branch
      %1318 = sbr.rel (0) target = $region21
    $region20: #{tpu_custom_call.1} parent=1 // pred_region
      _
    $region21: #{tpu_custom_call.1} parent=1 // pred_fallthru
      _
    // Predicated region
    $region22: #{tpu_custom_call.1} parent=1 // pred_check
      _
    $region23: #{tpu_custom_call.1} parent=1 // pred_check_branch
      %1320 = sbr.rel (0) target = $region25
    $region24: #{tpu_custom_call.1} parent=1 // pred_region
      _
    $region25: #{tpu_custom_call.1} parent=1 // pred_fallthru
      _
    // Predicated region
    $region26: #{tpu_custom_call.1} parent=1 // pred_check
      _
    $region27: #{tpu_custom_call.1} parent=1 // pred_check_branch
      %1322 = sbr.rel (0) target = $region29
    $region28: #{tpu_custom_call.1} parent=1 // pred_region
      _
    $region29: #{tpu_custom_call.1} parent=1 // pred_fallthru
      _
    // Predicated region
    $region30: #{tpu_custom_call.1} parent=1 // pred_check
      _
    $region31: #{tpu_custom_call.1} parent=1 // pred_check_branch
      %1324 = sbr.rel (0) target = $region33
    $region32: #{tpu_custom_call.1} parent=1 // pred_region
      _
    $region33: #{tpu_custom_call.1} parent=1 // pred_fallthru
      _
    %1325 = vsyncpa [#allocation3], 1

</llo_original>
